<compile_context>
chip_gen: v6e
topology: v6e:2x2x1
jax: 0.10.0
libtpu: 0.0.40
codegen_flags: <defaults>
</compile_context>

<pallas_src>
import math

import jax
import jax.numpy as jnp
from jax.experimental import pallas as pl
from jax.experimental.pallas import tpu as pltpu

SELU_SCALE = 1.0507009873554805
SELU_ALPHA = 1.6732632423543772


def _selu(x):
    return SELU_SCALE * jnp.where(x > 0.0, x, SELU_ALPHA * jnp.expm1(x))


def _round_up(x, m):
    return (x + m - 1) // m * m


def _xw_kernel(x_ref, w_ref, skip_ref, h_ref, hs_ref):
    """Pass 1: H = X @ W. Emits H in bf16 (MXU stream for A@H) and Hs = H*skip (f32)."""
    h = jnp.dot(x_ref[...], w_ref[...], preferred_element_type=jnp.float32)
    hs_ref[...] = h * skip_ref[...]
    h_ref[...] = h.astype(h_ref.dtype)


def _graph_conv_kernel(a_ref, hk_ref, hs_ref, o_ref, acc_ref):
    """Pass 2: out = selu(Hs + A @ H), tiled over (rows, reduction)."""
    k = pl.program_id(1)

    @pl.when(k == 0)
    def _():
        # Seed the accumulator with the (f32) skip term for this row tile.
        acc_ref[...] = hs_ref[...]

    # bf16 x bf16 MXU matmul, f32 accumulation.
    acc_ref[...] += jnp.dot(a_ref[...], hk_ref[...],
                            preferred_element_type=jnp.float32)

    @pl.when(k == pl.num_programs(1) - 1)
    def _():
        o_ref[...] = _selu(acc_ref[...]).astype(o_ref.dtype)


def gcn_layer_forward(features, graph, conv_w, skip_w, *, tm_target=256, tk_target=512):
    """Pallas implementation of GCNLayer.forward (skip_conn=True, bias=False, selu)."""
    assert tk_target % tm_target == 0, "tk_target must be a multiple of tm_target"

    features = features.astype(jnp.float32)
    graph_f32 = graph.astype(jnp.float32)
    conv_w = conv_w.astype(jnp.float32)
    skip_w2d = jnp.asarray(skip_w, jnp.float32).reshape(1, -1)

    n, in_dim = features.shape
    w_in, out_dim = conv_w.shape
    assert w_in == in_dim
    assert graph_f32.shape == (n, n)

    # Lane-dense output: pad feature dim to a multiple of 128.
    fp = _round_up(out_dim, 128)

    # Pick tiles / padded node count.
    if n <= tm_target:
        n_pad = _round_up(n, 128)
        tm = n_pad
        tk = n_pad
    else:
        n_pad = _round_up(n, tk_target)
        tm = tm_target
        tk = tk_target

    feat_p = jnp.pad(features, ((0, n_pad - n), (0, 0)))
    w_p = jnp.pad(conv_w, ((0, 0), (0, fp - out_dim)))
    skip_p = jnp.pad(skip_w2d, ((0, 0), (0, fp - out_dim)))
    # Adjacency streamed in bf16 (dominant HBM stream halved, native MXU rate).
    graph_bf16 = jnp.pad(graph_f32, ((0, n_pad - n), (0, n_pad - n))).astype(jnp.bfloat16)

    # ---- Pass 1: H = X @ W (bf16 copy) and Hs = H * skip_w (f32). ----
    h_bf16, hs = pl.pallas_call(
        _xw_kernel,
        out_shape=(jax.ShapeDtypeStruct((n_pad, fp), jnp.bfloat16),
                   jax.ShapeDtypeStruct((n_pad, fp), jnp.float32)),
        grid_spec=pltpu.PrefetchScalarGridSpec(
            num_scalar_prefetch=0,
            grid=(n_pad // tm,),
            in_specs=[
                pl.BlockSpec((tm, in_dim), lambda i: (i, 0)),
                pl.BlockSpec((in_dim, fp), lambda i: (0, 0)),
                pl.BlockSpec((1, fp), lambda i: (0, 0)),
            ],
            out_specs=[
                pl.BlockSpec((tm, fp), lambda i: (i, 0)),
                pl.BlockSpec((tm, fp), lambda i: (i, 0)),
            ],
        ),
        compiler_params=pltpu.CompilerParams(dimension_semantics=("parallel",)),
    )(feat_p, w_p, skip_p)

    # ---- Pass 2: out = selu(Hs + A @ H), accumulated over k tiles. ----
    out_p = pl.pallas_call(
        _graph_conv_kernel,
        out_shape=jax.ShapeDtypeStruct((n_pad, fp), jnp.float32),
        grid_spec=pltpu.PrefetchScalarGridSpec(
            num_scalar_prefetch=0,
            grid=(n_pad // tm, n_pad // tk),
            in_specs=[
                pl.BlockSpec((tm, tk), lambda i, k: (i, k)),   # A tile   (bf16)
                pl.BlockSpec((tk, fp), lambda i, k: (k, 0)),   # H k-tile (bf16)
                pl.BlockSpec((tm, fp), lambda i, k: (i, 0)),   # Hs i-tile (f32), resident over k
            ],
            out_specs=pl.BlockSpec((tm, fp), lambda i, k: (i, 0)),
            scratch_shapes=[pltpu.VMEM((tm, fp), jnp.float32)],
        ),
        compiler_params=pltpu.CompilerParams(
            dimension_semantics=("parallel", "arbitrary")),
    )(graph_bf16, h_bf16, hs)

    out = out_p[:n, :out_dim]
    # Module returns the (updated embedding, original adjacency) tuple.
    return out, graph_f32


def init_gcn_params(key, in_dim, out_dim):
    """Deterministic init matching GCNLayer.init_parameters: U(-stdv, stdv)."""
    stdv = 1.0 / math.sqrt(out_dim)
    k_w, k_s = jax.random.split(key)
    conv_w = jax.random.uniform(
        k_w, (in_dim, out_dim), jnp.float32, minval=-stdv, maxval=stdv
    )
    skip_w = jax.random.uniform(
        k_s, (out_dim,), jnp.float32, minval=-stdv, maxval=stdv
    )
    return conv_w, skip_w


if __name__ == "__main__":
    key = jax.random.PRNGKey(0)
    # Single defaults hidden=128; N=600 exercises row tiling, multi-step k
    # reduction and node padding (600 -> 1024 with TM=256, TK=512).
    N, IN_DIM, OUT_DIM = 600, 48, 128

    k_feat, k_graph, k_params = jax.random.split(key, 3)
    features = jax.random.normal(k_feat, (N, IN_DIM), jnp.float32)
    # Symmetric non-negative adjacency-like matrix.
    raw = jax.random.uniform(k_graph, (N, N), jnp.float32)
    graph = (raw + raw.T) * 0.5

    conv_w, skip_w = init_gcn_params(k_params, IN_DIM, OUT_DIM)

    out, graph_out = gcn_layer_forward(features, graph, conv_w, skip_w)
    out = jax.block_until_ready(out)
    graph_out = jax.block_until_ready(graph_out)

    # Reference in plain JAX, mirroring the kernel's bf16 adjacency / bf16 A@H operand.
    h = features @ conv_w
    h_b = h.astype(jnp.bfloat16).astype(jnp.float32)
    a_b = graph.astype(jnp.bfloat16).astype(jnp.float32)
    ref = h * skip_w + a_b @ h_b
    ref = SELU_SCALE * jnp.where(ref > 0.0, ref, SELU_ALPHA * jnp.expm1(ref))

    assert out.shape == (N, OUT_DIM), f"bad output shape {out.shape}"
    assert jnp.allclose(graph_out, graph), "adjacency not passed through"
    max_err = jnp.max(jnp.abs(out - ref))
    assert jnp.allclose(out, ref, atol=1e-2, rtol=1e-2), (
        f"mismatch vs reference, max abs err {max_err}"
    )

    print("KERNEL_OK")
</pallas_src>

<mosaic_0001>
module attributes {stable_mosaic.version = 11 : i64} {
  func.func @_xw_kernel(%arg0: i32, %arg1: memref<256x48xf32, #tpu.memory_space<vmem>>, %arg2: memref<48x128xf32, #tpu.memory_space<vmem>>, %arg3: memref<1x128xf32, #tpu.memory_space<vmem>>, %arg4: memref<256x128xbf16, #tpu.memory_space<vmem>>, %arg5: memref<256x128xf32, #tpu.memory_space<vmem>>) attributes {dimension_semantics = [#tpu.dimension_semantics<parallel>], iteration_bounds = array<i64: 4>, scalar_prefetch = 0 : i64, scratch_operands = 0 : i64, tpu.core_type = #tpu.core_type<tc>, window_params = [{transform_indices = @transform_0, window_bounds = array<i64: 256, 48>}, {pipeline_mode = #tpu.pipeline_mode<synchronous>, transform_indices = @transform_1, window_bounds = array<i64: 48, 128>}, {pipeline_mode = #tpu.pipeline_mode<synchronous>, transform_indices = @transform_2, window_bounds = array<i64: 1, 128>}, {transform_indices = @transform_3, window_bounds = array<i64: 256, 128>}, {transform_indices = @transform_4, window_bounds = array<i64: 256, 128>}]} {
    %c0 = arith.constant 0 : index
    %c0_0 = arith.constant 0 : index
    %0 = vector.load %arg1[%c0, %c0_0] : memref<256x48xf32, #tpu.memory_space<vmem>>, vector<256x48xf32>
    %c0_1 = arith.constant 0 : index
    %c0_2 = arith.constant 0 : index
    %1 = vector.load %arg2[%c0_1, %c0_2] : memref<48x128xf32, #tpu.memory_space<vmem>>, vector<48x128xf32>
    %cst = arith.constant dense<0.000000e+00> : vector<256x128xf32>
    %2 = tpu.matmul %0, %1, %cst {dimension_numbers = #tpu.dot_dimension_numbers<[1], [0], [0], [1], [0, 0, 1, 1], [], []>} : vector<256x48xf32>, vector<48x128xf32>, vector<256x128xf32> -> vector<256x128xf32>
    %c0_3 = arith.constant 0 : index
    %c0_4 = arith.constant 0 : index
    %3 = vector.load %arg3[%c0_3, %c0_4] : memref<1x128xf32, #tpu.memory_space<vmem>>, vector<1x128xf32>
    %4 = vector.broadcast %3 : vector<1x128xf32> to vector<256x128xf32>
    %5 = arith.mulf %2, %4 : vector<256x128xf32>
    %c0_5 = arith.constant 0 : index
    %c0_6 = arith.constant 0 : index
    %6 = vector.load %arg5[%c0_5, %c0_6] : memref<256x128xf32, #tpu.memory_space<vmem>>, vector<256x128xf32>
    tpu.vector_store %arg5[%c0_5, %c0_6], %5 {strides = array<i32>} : memref<256x128xf32, #tpu.memory_space<vmem>>, vector<256x128xf32>,
    %7 = arith.truncf %2 : vector<256x128xf32> to vector<256x128xbf16>
    %c0_7 = arith.constant 0 : index
    %c0_8 = arith.constant 0 : index
    %8 = vector.load %arg4[%c0_7, %c0_8] : memref<256x128xbf16, #tpu.memory_space<vmem>>, vector<256x128xbf16>
    tpu.vector_store %arg4[%c0_7, %c0_8], %7 {strides = array<i32>} : memref<256x128xbf16, #tpu.memory_space<vmem>>, vector<256x128xbf16>,
    return
  }
  func.func @transform_0(%arg0: i32) -> (i32, i32) {
    %c0_i32 = arith.constant 0 : i32
    %c0_i32_0 = arith.constant 0 : i32
    return %arg0, %c0_i32 : i32, i32
  }
  func.func @transform_1(%arg0: i32) -> (i32, i32) {
    %c0_i32 = arith.constant 0 : i32
    %c0_i32_0 = arith.constant 0 : i32
    %c0_i32_1 = arith.constant 0 : i32
    return %c0_i32, %c0_i32_0 : i32, i32
  }
  func.func @transform_2(%arg0: i32) -> (i32, i32) {
    %c0_i32 = arith.constant 0 : i32
    %c0_i32_0 = arith.constant 0 : i32
    %c0_i32_1 = arith.constant 0 : i32
    return %c0_i32, %c0_i32_0 : i32, i32
  }
  func.func @transform_3(%arg0: i32) -> (i32, i32) {
    %c0_i32 = arith.constant 0 : i32
    %c0_i32_0 = arith.constant 0 : i32
    return %arg0, %c0_i32 : i32, i32
  }
  func.func @transform_4(%arg0: i32) -> (i32, i32) {
    %c0_i32 = arith.constant 0 : i32
    %c0_i32_0 = arith.constant 0 : i32
    return %arg0, %c0_i32 : i32, i32
  }
}

</mosaic_0001>

<llo_original>
// kernel: tpu_custom_call.1
$region0: #{tpu_custom_call.1}
  #allocation0 [shape = 'u32[]', space=smem, size = 0x4, offset = 0x4, fixed_abs, tag = 'smem constant byte address 0x4 - core index']
  #allocation1 [shape = 'u32[144,128]{1,0:T(1,128)}', space=vmem, size = 0x12000, scoped, tag = 'internal scratch']
  %s0 = inlined_call_operand.vmem [shape: f32[1024,48], index: 0, kind: input, shape index: {}]
  %s1 = inlined_call_operand.vmem [shape: f32[48,128], index: 1, kind: input, shape index: {}]
  %s2 = inlined_call_operand.vmem [shape: f32[1,128], index: 2, kind: input, shape index: {}]
  %s3 = inlined_call_operand.hbm [shape: bf16[1024,128], index: 3, kind: output, shape index: {0}]
  %s4 = inlined_call_operand.hbm [shape: f32[1024,128], index: 4, kind: output, shape index: {1}]
  %5 = xla_tuple %s3, %s4
  %s6 = sld [smem:[#allocation0]]
  $region53: #{tpu_custom_call.1} parent=0
    _
  %s8 = ssub.s32 1, %s6
  %s9 = scalar_select 0, %s8, %s6
  $region1: #{tpu_custom_call.1} parent=0
    #allocation2 [shape = 'u8[131072]{0}', space=vmem, size = 0x20000, scoped, tag = 'output window, operand 0']
    #allocation3 [shape = 's32[2]{0}', space=sflag, size = 0x8, scoped, tag = 'scoped memory for tpu_custom_call.1']
    #allocation4 [shape = 'u8[262144]{0}', space=vmem, size = 0x40000, scoped, tag = 'output window, operand 1']
    #allocation5 [shape = 's32[2]{0}', space=sflag, size = 0x8, scoped, tag = 'scoped memory for tpu_custom_call.1']
    %10 = vsyncpa [#allocation3], 0
    %s11 = scalar_lea.sflag [#allocation3], 1
    %12 = vsyncpa %s11, 0
    %13 = vsyncpa [#allocation5], 0
    %s14 = scalar_lea.sflag [#allocation5], 1
    %15 = vsyncpa %s14, 0
    loop: start=0, step=1, limit=6
    $region2: #{tpu_custom_call.1} parent=1 // loop_pre_header
      _
    $region3: #{tpu_custom_call.1} parent=1 // loop_header
      %s17 = sphi 0, %s21
      %p18 = scmp.ge.s32.totalorder %s17, 6
      %s27 = sphi 0, %s29
      %s30 = sphi 0, %s27
      %s31 = sphi 0, %s30
      %s47 = sphi 0, %s31
      %s51 = sphi 0, %s51
      %s53 = sphi 0, %s51
      %s54 = sphi 0, %s53
      %s68 = sphi 0, %s54
      %s72 = sphi 0, %s72
      %s74 = sphi 0, %s72
      %s75 = sphi 0, %s74
      %s89 = sphi 0, %s75
      %s95 = sphi 0, %s97
      %s98 = sphi 0, %s95
      %s99 = sphi 0, %s98
      %s115 = sphi 0, %s99
      %s121 = sphi 0, %s123
      %s124 = sphi 0, %s121
      %s125 = sphi 0, %s124
      %s141 = sphi 0, %s125
    $region4: #{tpu_custom_call.1} parent=1 // loop_header_branch
      %20 = sbr.rel (%p18) target = $region8
    $region5: #{tpu_custom_call.1} parent=1 // loop_body
      %s22 = ssub.s32 %s17, 1
      %s23 = ssub.s32 %s17, 2
      %s24 = sadd.s32 %s17, 1
      %s25 = ssub.s32 %s17, %s24
      %p26 = scmp.eq.s32.totalorder %s25, 0
      %s28 = sadd.s32 %s27, 1
      %s29 = scalar_select %p26, %s27, %s28
      %p32 = pneg %p26
      %p33 = scmp.eq.s32.totalorder %s17, 3
      %p34 = por %p32, %p33
      %p35 = scmp.ne.s32.totalorder %s27, %s30
      %p36 = scmp.eq.s32.totalorder %s17, 0
      %p37 = por %p35, %p36
      %p38 = scmp.ne.s32.totalorder %s27, %s30
      %p39 = scmp.eq.s32.totalorder %s22, 3
      %p40 = por %p38, %p39
      %p41 = scmp.ne.s32.totalorder %s30, %s31
      %p42 = scmp.eq.s32.totalorder %s22, 0
      %p43 = por %p41, %p42
      %p44 = scmp.ne.s32.totalorder %s30, %s31
      %p45 = scmp.eq.s32.totalorder %s23, 3
      %p46 = por %p44, %p45
      %p48 = scmp.ne.s32.totalorder %s31, %s47
      %p49 = scmp.eq.s32.totalorder %s23, 0
      %p50 = por %p48, %p49
      %s52 = sadd.s32 %s51, 1
      %p55 = scmp.eq.s32.totalorder %s17, 3
      %p56 = scmp.ne.s32.totalorder %s51, %s53
      %p57 = scmp.eq.s32.totalorder %s17, 0
      %p58 = por %p56, %p57
      %p59 = scmp.ne.s32.totalorder %s51, %s53
      %p60 = scmp.eq.s32.totalorder %s22, 3
      %p61 = por %p59, %p60
      %p62 = scmp.ne.s32.totalorder %s53, %s54
      %p63 = scmp.eq.s32.totalorder %s22, 0
      %p64 = por %p62, %p63
      %p65 = scmp.ne.s32.totalorder %s53, %s54
      %p66 = scmp.eq.s32.totalorder %s23, 3
      %p67 = por %p65, %p66
      %p69 = scmp.ne.s32.totalorder %s54, %s68
      %p70 = scmp.eq.s32.totalorder %s23, 0
      %p71 = por %p69, %p70
      %s73 = sadd.s32 %s72, 1
      %p76 = scmp.eq.s32.totalorder %s17, 3
      %p77 = scmp.ne.s32.totalorder %s72, %s74
      %p78 = scmp.eq.s32.totalorder %s17, 0
      %p79 = por %p77, %p78
      %p80 = scmp.ne.s32.totalorder %s72, %s74
      %p81 = scmp.eq.s32.totalorder %s22, 3
      %p82 = por %p80, %p81
      %p83 = scmp.ne.s32.totalorder %s74, %s75
      %p84 = scmp.eq.s32.totalorder %s22, 0
      %p85 = por %p83, %p84
      %p86 = scmp.ne.s32.totalorder %s74, %s75
      %p87 = scmp.eq.s32.totalorder %s23, 3
      %p88 = por %p86, %p87
      %p90 = scmp.ne.s32.totalorder %s75, %s89
      %p91 = scmp.eq.s32.totalorder %s23, 0
      %p92 = por %p90, %p91
      %s93 = ssub.s32 %s17, %s24
      %p94 = scmp.eq.s32.totalorder %s93, 0
      %s96 = sadd.s32 %s95, 1
      %s97 = scalar_select %p94, %s95, %s96
      %p100 = pneg %p94
      %p101 = scmp.eq.s32.totalorder %s17, 3
      %p102 = por %p100, %p101
      %p103 = scmp.ne.s32.totalorder %s95, %s98
      %p104 = scmp.eq.s32.totalorder %s17, 0
      %p105 = por %p103, %p104
      %p106 = scmp.ne.s32.totalorder %s95, %s98
      %p107 = scmp.eq.s32.totalorder %s22, 3
      %p108 = por %p106, %p107
      %p109 = scmp.ne.s32.totalorder %s98, %s99
      %p110 = scmp.eq.s32.totalorder %s22, 0
      %p111 = por %p109, %p110
      %p112 = scmp.ne.s32.totalorder %s98, %s99
      %p113 = scmp.eq.s32.totalorder %s23, 3
      %p114 = por %p112, %p113
      %p116 = scmp.ne.s32.totalorder %s99, %s115
      %p117 = scmp.eq.s32.totalorder %s23, 0
      %p118 = por %p116, %p117
      %s119 = ssub.s32 %s17, %s24
      %p120 = scmp.eq.s32.totalorder %s119, 0
      %s122 = sadd.s32 %s121, 1
      %s123 = scalar_select %p120, %s121, %s122
      %p126 = pneg %p120
      %p127 = scmp.eq.s32.totalorder %s17, 3
      %p128 = por %p126, %p127
      %p129 = scmp.ne.s32.totalorder %s121, %s124
      %p130 = scmp.eq.s32.totalorder %s17, 0
      %p131 = por %p129, %p130
      %p132 = scmp.ne.s32.totalorder %s121, %s124
      %p133 = scmp.eq.s32.totalorder %s22, 3
      %p134 = por %p132, %p133
      %p135 = scmp.ne.s32.totalorder %s124, %s125
      %p136 = scmp.eq.s32.totalorder %s22, 0
      %p137 = por %p135, %p136
      %p138 = scmp.ne.s32.totalorder %s124, %s125
      %p139 = scmp.eq.s32.totalorder %s23, 3
      %p140 = por %p138, %p139
      %p142 = scmp.ne.s32.totalorder %s125, %s141
      %p143 = scmp.eq.s32.totalorder %s23, 0
      %p144 = por %p142, %p143
      %p145 = scmp.le.s32.totalorder 1, %s17
      %p146 = scmp.lt.s32.totalorder %s17, 5
      %p147 = pnand %p145, %p146
      %p148 = pneg %p147
      // Predicated region
      $region9: #{tpu_custom_call.1} parent=5 // pred_check
        _
      $region10: #{tpu_custom_call.1} parent=5 // pred_check_branch
        %150 = sbr.rel (%p147) target = $region12
      $region11: #{tpu_custom_call.1} parent=5 // pred_region
        %s151 = ssub.s32 %s17, 1
        // Predicated region
        $region13: #{tpu_custom_call.1} parent=11 // pred_check
          %p152 = pneg %p64
        $region14: #{tpu_custom_call.1} parent=11 // pred_check_branch
          %154 = sbr.rel (%p152) target = $region16
        $region15: #{tpu_custom_call.1} parent=11 // pred_region
          _
        $region16: #{tpu_custom_call.1} parent=11 // pred_fallthru
          _
        // Predicated region
        $region17: #{tpu_custom_call.1} parent=11 // pred_check
          %p155 = pneg %p85
        $region18: #{tpu_custom_call.1} parent=11 // pred_check_branch
          %157 = sbr.rel (%p155) target = $region20
        $region19: #{tpu_custom_call.1} parent=11 // pred_region
          _
        $region20: #{tpu_custom_call.1} parent=11 // pred_fallthru
          _
      $region12: #{tpu_custom_call.1} parent=5 // pred_fallthru
        _
      %p158 = scmp.lt.s32.totalorder %s17, 4
      // Predicated region
      $region21: #{tpu_custom_call.1} parent=5 // pred_check
        %p159 = pneg %p158
      $region22: #{tpu_custom_call.1} parent=5 // pred_check_branch
        %161 = sbr.rel (%p159) target = $region24
      $region23: #{tpu_custom_call.1} parent=5 // pred_region
        // Predicated region
        $region25: #{tpu_custom_call.1} parent=23 // pred_check
          %p162 = pneg %p37
        $region26: #{tpu_custom_call.1} parent=23 // pred_check_branch
          %164 = sbr.rel (%p162) target = $region28
        $region27: #{tpu_custom_call.1} parent=23 // pred_region
          %s165 = smul.u32 32, %s17
          %p166 = scmp.lt.s32.totalorder %s165, 127
          %s167 = scalar_select %p166, %s165, 127
          %s168 = smul.addr %s167, 8
          %s169 = scalar_lea.vmem %s0, %s168
          %s170 = smul.u32 32, %s17
        $region28: #{tpu_custom_call.1} parent=23 // pred_fallthru
          _
      $region24: #{tpu_custom_call.1} parent=5 // pred_fallthru
        _
      %p171 = scmp.le.s32.totalorder 1, %s17
      %p172 = scmp.lt.s32.totalorder %s17, 5
      %p173 = pnand %p171, %p172
      %p174 = pneg %p173
      // Predicated region
      $region29: #{tpu_custom_call.1} parent=5 // pred_check
        _
      $region30: #{tpu_custom_call.1} parent=5 // pred_check_branch
        %176 = sbr.rel (%p173) target = $region32
      $region31: #{tpu_custom_call.1} parent=5 // pred_region
        %s177 = ssub.s32 %s17, 1
        %s178 = smul.u32 32, %s22
        %p179 = scmp.lt.s32.totalorder %s178, 127
        %s180 = scalar_select %p179, %s178, 127
        %s181 = smul.addr %s180, 8
        %s182 = scalar_lea.vmem %s0, %s181
        %p183 = pneg %p43
        %p184 = pneg %p40
        %p185 = pneg %p64
        %p186 = pneg %p61
        %p187 = pneg %p85
        %p188 = pneg %p82
        %p189 = pneg %p111
        %p190 = pneg %p108
        %s191 = sand.u32 %s98, 1
        %s192 = scalar_lea.sflag [#allocation3], %s191
        %s193 = sand.u32 %s98, 1
        %s194 = smul.addr %s193, 128
        %s195 = scalar_lea.vmem [#allocation2], %s194
        %p196 = pneg %p137
        %p197 = pneg %p134
        %s198 = sand.u32 %s124, 1
        %s199 = scalar_lea.sflag [#allocation5], %s198
        %s200 = sand.u32 %s124, 1
        %s201 = smul.addr %s200, 256
        %s202 = scalar_lea.vmem [#allocation4], %s201
        %s203 = smul.u32 32, %s22
        %p204 = scmp.lt.s32.totalorder %s203, 127
        %s205 = scalar_select %p204, %s203, 127
        %s206 = smul.addr %s205, 8
        %s207 = scalar_lea.vmem %s0, %s206
        %s208 = smul.u32 32, %s22
        %s209 = smul.u32 32, %s22
        %s210 = smul.u32 32, %s22
        %v211 = vld [vmem:[%s207] sm:$0xff]
        %v212 = vld [vmem:[%s207 + $0x8] sm:$0xff]
        %v213 = vld [vmem:[%s207 + $0x10] sm:$0xff]
        %v214 = vld [vmem:[%s207 + $0x18] sm:$0xff]
        %v215 = vld [vmem:[%s207 + $0x20] sm:$0xff]
        %v216 = vld [vmem:[%s207 + $0x28] sm:$0xff]
        %v217 = vld [vmem:[%s207 + $0x30] sm:$0xff]
        %v218 = vld [vmem:[%s207 + $0x38] sm:$0xff]
        %v219 = vld [vmem:[%s207 + $0x40] sm:$0xff]
        %v220 = vld [vmem:[%s207 + $0x48] sm:$0xff]
        %v221 = vld [vmem:[%s207 + $0x50] sm:$0xff]
        %v222 = vld [vmem:[%s207 + $0x58] sm:$0xff]
        %v223 = vld [vmem:[%s207 + $0x60] sm:$0xff]
        %v224 = vld [vmem:[%s207 + $0x68] sm:$0xff]
        %v225 = vld [vmem:[%s207 + $0x70] sm:$0xff]
        %v226 = vld [vmem:[%s207 + $0x78] sm:$0xff]
        %v227 = vld [vmem:[%s207 + $0x80] sm:$0xff]
        %v228 = vld [vmem:[%s207 + $0x88] sm:$0xff]
        %v229 = vld [vmem:[%s207 + $0x90] sm:$0xff]
        %v230 = vld [vmem:[%s207 + $0x98] sm:$0xff]
        %v231 = vld [vmem:[%s207 + $0xa0] sm:$0xff]
        %v232 = vld [vmem:[%s207 + $0xa8] sm:$0xff]
        %v233 = vld [vmem:[%s207 + $0xb0] sm:$0xff]
        %v234 = vld [vmem:[%s207 + $0xb8] sm:$0xff]
        %v235 = vld [vmem:[%s207 + $0xc0] sm:$0xff]
        %v236 = vld [vmem:[%s207 + $0xc8] sm:$0xff]
        %v237 = vld [vmem:[%s207 + $0xd0] sm:$0xff]
        %v238 = vld [vmem:[%s207 + $0xd8] sm:$0xff]
        %v239 = vld [vmem:[%s207 + $0xe0] sm:$0xff]
        %v240 = vld [vmem:[%s207 + $0xe8] sm:$0xff]
        %v241 = vld [vmem:[%s207 + $0xf0] sm:$0xff]
        %v242 = vld [vmem:[%s207 + $0xf8] sm:$0xff]
        %v243 = vld [vmem:[%s1] sm:$0xff]
        %v244 = vld [vmem:[%s1 + $0x8] sm:$0xff]
        %v245 = vld [vmem:[%s1 + $0x10] sm:$0xff]
        %v246 = vld [vmem:[%s1 + $0x18] sm:$0xff]
        %v247 = vld [vmem:[%s1 + $0x20] sm:$0xff]
        %v248 = vld [vmem:[%s1 + $0x28] sm:$0xff]
        %vm249 = vcmask 392192
        %v251 = vsel %vm249, %v211, 0
        %v254 = vsel %vm249, %v212, 0
        %v257 = vsel %vm249, %v213, 0
        %v260 = vsel %vm249, %v214, 0
        %v263 = vsel %vm249, %v215, 0
        %v266 = vsel %vm249, %v216, 0
        %v269 = vsel %vm249, %v217, 0
        %v272 = vsel %vm249, %v218, 0
        %v275 = vsel %vm249, %v219, 0
        %v278 = vsel %vm249, %v220, 0
        %v281 = vsel %vm249, %v221, 0
        %v284 = vsel %vm249, %v222, 0
        %v287 = vsel %vm249, %v223, 0
        %v290 = vsel %vm249, %v224, 0
        %v293 = vsel %vm249, %v225, 0
        %v296 = vsel %vm249, %v226, 0
        %v299 = vsel %vm249, %v227, 0
        %v302 = vsel %vm249, %v228, 0
        %v305 = vsel %vm249, %v229, 0
        %v308 = vsel %vm249, %v230, 0
        %v311 = vsel %vm249, %v231, 0
        %v314 = vsel %vm249, %v232, 0
        %v317 = vsel %vm249, %v233, 0
        %v320 = vsel %vm249, %v234, 0
        %v323 = vsel %vm249, %v235, 0
        %v326 = vsel %vm249, %v236, 0
        %v329 = vsel %vm249, %v237, 0
        %v332 = vsel %vm249, %v238, 0
        %v335 = vsel %vm249, %v239, 0
        %v338 = vsel %vm249, %v240, 0
        %v341 = vsel %vm249, %v241, 0
        %v344 = vsel %vm249, %v242, 0
        %346 = vmatprep.subr.mxu0 0.0
        %347 = vmatpush1.msra.mxu0 0.0
        %348 = vmatprep.subr.mxu0 0.0
        %349 = vmatpush1.msra.mxu0 0.0
        %350 = vmatprep.subr.mxu0 0.0
        %351 = vmatpush1.msra.mxu0 0.0
        %352 = vmatprep.subr.mxu0 0.0
        %353 = vmatpush1.msra.mxu0 0.0
        %354 = vmatprep.subr.mxu0 0.0
        %355 = vmatpush1.msra.mxu0 0.0
        %356 = vmatprep.subr.mxu0 0.0
        %357 = vmatpush1.msra.mxu0 0.0
        %358 = vmatprep.subr.mxu0 0.0
        %359 = vmatpush1.msra.mxu0 0.0
        %360 = vmatprep.subr.mxu0 0.0
        %361 = vmatpush1.msra.mxu0 0.0
        %362 = vmatprep.subr.mxu0 0.0
        %363 = vmatpush1.msra.mxu0 0.0
        %364 = vmatprep.subr.mxu0 0.0
        %365 = vmatpush1.msra.mxu0 0.0
        %366 = vmatprep.subr.mxu0 0.0
        %367 = vmatpush1.msra.mxu0 %v248
        %368 = vmatprep.subr.mxu0 0.0
        %369 = vmatpush1.msra.mxu0 %v247
        %370 = vmatprep.subr.mxu0 0.0
        %371 = vmatpush1.msra.mxu0 %v246
        %372 = vmatprep.subr.mxu0 0.0
        %373 = vmatpush1.msra.mxu0 %v245
        %374 = vmatprep.subr.mxu0 0.0
        %375 = vmatpush1.msra.mxu0 %v244
        %376 = vmatprep.subr.mxu0 0.0
        %377 = vmatpush1.msra.mxu0 %v243
        %378 = vmatprep.subr.mxu0 0.0
        %379 = vmatpush2.msra.mxu0 0.0
        %380 = vmatprep.subr.mxu0 0.0
        %381 = vmatpush2.msra.mxu0 0.0
        %382 = vmatprep.subr.mxu0 0.0
        %383 = vmatpush2.msra.mxu0 0.0
        %384 = vmatprep.subr.mxu0 0.0
        %385 = vmatpush2.msra.mxu0 0.0
        %386 = vmatprep.subr.mxu0 0.0
        %387 = vmatpush2.msra.mxu0 0.0
        %388 = vmatprep.subr.mxu0 0.0
        %389 = vmatpush2.msra.mxu0 0.0
        %390 = vmatprep.subr.mxu0 0.0
        %391 = vmatpush2.msra.mxu0 0.0
        %392 = vmatprep.subr.mxu0 0.0
        %393 = vmatpush2.msra.mxu0 0.0
        %394 = vmatprep.subr.mxu0 0.0
        %395 = vmatpush2.msra.mxu0 0.0
        %396 = vmatprep.subr.mxu0 0.0
        %397 = vmatpush2.msra.mxu0 0.0
        %398 = vmatprep.subr.mxu0 0.0
        %399 = vmatpush2.msra.mxu0 0.0
        %400 = vmatprep.subr.mxu0 0.0
        %401 = vmatpush2.msra.mxu0 0.0
        %402 = vmatprep.subr.mxu0 0.0
        %403 = vmatpush2.msra.mxu0 0.0
        %404 = vmatprep.subr.mxu0 0.0
        %405 = vmatpush2.msra.mxu0 0.0
        %406 = vmatprep.subr.mxu0 0.0
        %407 = vmatpush2.msra.mxu0 0.0
        %408 = vmatprep.subr.mxu0 0.0
        %409 = vmatpush2.msra.mxu0 0.0
        %410 = vmatprep.mubr.f32.mxu0 0.0
        %411 = vmatmul.mubr.f32.gmra.mxu0 %v251
        %v412 = vpop.f32.mrf.mxu0
        %v413 = vadd.f32 0.0, %v412
        %v414 = vpop.f32.mrf.mxu0
        %415 = vmatprep.mubr.f32.mxu0 0.0
        %416 = vmatmul.mubr.f32.gmra.mxu0 %v254
        %v417 = vpop.f32.mrf.mxu0
        %v418 = vadd.f32 0.0, %v417
        %v419 = vpop.f32.mrf.mxu0
        %420 = vmatprep.mubr.f32.mxu0 0.0
        %421 = vmatmul.mubr.f32.gmra.mxu0 %v257
        %v422 = vpop.f32.mrf.mxu0
        %v423 = vadd.f32 0.0, %v422
        %v424 = vpop.f32.mrf.mxu0
        %425 = vmatprep.mubr.f32.mxu0 0.0
        %426 = vmatmul.mubr.f32.gmra.mxu0 %v260
        %v427 = vpop.f32.mrf.mxu0
        %v428 = vadd.f32 0.0, %v427
        %v429 = vpop.f32.mrf.mxu0
        %430 = vmatprep.mubr.f32.mxu0 0.0
        %431 = vmatmul.mubr.f32.gmra.mxu0 %v263
        %v432 = vpop.f32.mrf.mxu0
        %v433 = vadd.f32 0.0, %v432
        %v434 = vpop.f32.mrf.mxu0
        %435 = vmatprep.mubr.f32.mxu0 0.0
        %436 = vmatmul.mubr.f32.gmra.mxu0 %v266
        %v437 = vpop.f32.mrf.mxu0
        %v438 = vadd.f32 0.0, %v437
        %v439 = vpop.f32.mrf.mxu0
        %440 = vmatprep.mubr.f32.mxu0 0.0
        %441 = vmatmul.mubr.f32.gmra.mxu0 %v269
        %v442 = vpop.f32.mrf.mxu0
        %v443 = vadd.f32 0.0, %v442
        %v444 = vpop.f32.mrf.mxu0
        %445 = vmatprep.mubr.f32.mxu0 0.0
        %446 = vmatmul.mubr.f32.gmra.mxu0 %v272
        %v447 = vpop.f32.mrf.mxu0
        %v448 = vadd.f32 0.0, %v447
        %v449 = vpop.f32.mrf.mxu0
        %450 = vmatprep.mubr.f32.mxu0 0.0
        %451 = vmatmul.mubr.f32.gmra.mxu0 %v275
        %v452 = vpop.f32.mrf.mxu0
        %v453 = vadd.f32 0.0, %v452
        %v454 = vpop.f32.mrf.mxu0
        %455 = vmatprep.mubr.f32.mxu0 0.0
        %456 = vmatmul.mubr.f32.gmra.mxu0 %v278
        %v457 = vpop.f32.mrf.mxu0
        %v458 = vadd.f32 0.0, %v457
        %v459 = vpop.f32.mrf.mxu0
        %460 = vmatprep.mubr.f32.mxu0 0.0
        %461 = vmatmul.mubr.f32.gmra.mxu0 %v281
        %v462 = vpop.f32.mrf.mxu0
        %v463 = vadd.f32 0.0, %v462
        %v464 = vpop.f32.mrf.mxu0
        %465 = vmatprep.mubr.f32.mxu0 0.0
        %466 = vmatmul.mubr.f32.gmra.mxu0 %v284
        %v467 = vpop.f32.mrf.mxu0
        %v468 = vadd.f32 0.0, %v467
        %v469 = vpop.f32.mrf.mxu0
        %470 = vmatprep.mubr.f32.mxu0 0.0
        %471 = vmatmul.mubr.f32.gmra.mxu0 %v287
        %v472 = vpop.f32.mrf.mxu0
        %v473 = vadd.f32 0.0, %v472
        %v474 = vpop.f32.mrf.mxu0
        %475 = vmatprep.mubr.f32.mxu0 0.0
        %476 = vmatmul.mubr.f32.gmra.mxu0 %v290
        %v477 = vpop.f32.mrf.mxu0
        %v478 = vadd.f32 0.0, %v477
        %v479 = vpop.f32.mrf.mxu0
        %480 = vmatprep.mubr.f32.mxu0 0.0
        %481 = vmatmul.mubr.f32.gmra.mxu0 %v293
        %v482 = vpop.f32.mrf.mxu0
        %v483 = vadd.f32 0.0, %v482
        %v484 = vpop.f32.mrf.mxu0
        %485 = vmatprep.mubr.f32.mxu0 0.0
        %486 = vmatmul.mubr.f32.gmra.mxu0 %v296
        %v487 = vpop.f32.mrf.mxu0
        %v488 = vadd.f32 0.0, %v487
        %v489 = vpop.f32.mrf.mxu0
        %490 = vmatprep.mubr.f32.mxu0 0.0
        %491 = vmatmul.mubr.f32.gmra.mxu0 %v299
        %v492 = vpop.f32.mrf.mxu0
        %v493 = vadd.f32 0.0, %v492
        %v494 = vpop.f32.mrf.mxu0
        %495 = vmatprep.mubr.f32.mxu0 0.0
        %496 = vmatmul.mubr.f32.gmra.mxu0 %v302
        %v497 = vpop.f32.mrf.mxu0
        %v498 = vadd.f32 0.0, %v497
        %v499 = vpop.f32.mrf.mxu0
        %500 = vmatprep.mubr.f32.mxu0 0.0
        %501 = vmatmul.mubr.f32.gmra.mxu0 %v305
        %v502 = vpop.f32.mrf.mxu0
        %v503 = vadd.f32 0.0, %v502
        %v504 = vpop.f32.mrf.mxu0
        %505 = vmatprep.mubr.f32.mxu0 0.0
        %506 = vmatmul.mubr.f32.gmra.mxu0 %v308
        %v507 = vpop.f32.mrf.mxu0
        %v508 = vadd.f32 0.0, %v507
        %v509 = vpop.f32.mrf.mxu0
        %510 = vmatprep.mubr.f32.mxu0 0.0
        %511 = vmatmul.mubr.f32.gmra.mxu0 %v311
        %v512 = vpop.f32.mrf.mxu0
        %v513 = vadd.f32 0.0, %v512
        %v514 = vpop.f32.mrf.mxu0
        %515 = vmatprep.mubr.f32.mxu0 0.0
        %516 = vmatmul.mubr.f32.gmra.mxu0 %v314
        %v517 = vpop.f32.mrf.mxu0
        %v518 = vadd.f32 0.0, %v517
        %v519 = vpop.f32.mrf.mxu0
        %520 = vmatprep.mubr.f32.mxu0 0.0
        %521 = vmatmul.mubr.f32.gmra.mxu0 %v317
        %v522 = vpop.f32.mrf.mxu0
        %v523 = vadd.f32 0.0, %v522
        %v524 = vpop.f32.mrf.mxu0
        %525 = vmatprep.mubr.f32.mxu0 0.0
        %526 = vmatmul.mubr.f32.gmra.mxu0 %v320
        %v527 = vpop.f32.mrf.mxu0
        %v528 = vadd.f32 0.0, %v527
        %v529 = vpop.f32.mrf.mxu0
        %530 = vmatprep.mubr.f32.mxu0 0.0
        %531 = vmatmul.mubr.f32.gmra.mxu0 %v323
        %v532 = vpop.f32.mrf.mxu0
        %v533 = vadd.f32 0.0, %v532
        %v534 = vpop.f32.mrf.mxu0
        %535 = vmatprep.mubr.f32.mxu0 0.0
        %536 = vmatmul.mubr.f32.gmra.mxu0 %v326
        %v537 = vpop.f32.mrf.mxu0
        %v538 = vadd.f32 0.0, %v537
        %v539 = vpop.f32.mrf.mxu0
        %540 = vmatprep.mubr.f32.mxu0 0.0
        %541 = vmatmul.mubr.f32.gmra.mxu0 %v329
        %v542 = vpop.f32.mrf.mxu0
        %v543 = vadd.f32 0.0, %v542
        %v544 = vpop.f32.mrf.mxu0
        %545 = vmatprep.mubr.f32.mxu0 0.0
        %546 = vmatmul.mubr.f32.gmra.mxu0 %v332
        %v547 = vpop.f32.mrf.mxu0
        %v548 = vadd.f32 0.0, %v547
        %v549 = vpop.f32.mrf.mxu0
        %550 = vmatprep.mubr.f32.mxu0 0.0
        %551 = vmatmul.mubr.f32.gmra.mxu0 %v335
        %v552 = vpop.f32.mrf.mxu0
        %v553 = vadd.f32 0.0, %v552
        %v554 = vpop.f32.mrf.mxu0
        %555 = vmatprep.mubr.f32.mxu0 0.0
        %556 = vmatmul.mubr.f32.gmra.mxu0 %v338
        %v557 = vpop.f32.mrf.mxu0
        %v558 = vadd.f32 0.0, %v557
        %v559 = vpop.f32.mrf.mxu0
        %560 = vmatprep.mubr.f32.mxu0 0.0
        %561 = vmatmul.mubr.f32.gmra.mxu0 %v341
        %v562 = vpop.f32.mrf.mxu0
        %v563 = vadd.f32 0.0, %v562
        %v564 = vpop.f32.mrf.mxu0
        %565 = vmatprep.mubr.f32.mxu0 0.0
        %566 = vmatmul.mubr.f32.gmra.mxu0 %v344
        %v567 = vpop.f32.mrf.mxu0
        %v568 = vadd.f32 0.0, %v567
        %v569 = vpop.f32.mrf.mxu0
        %570 = vdwg.mxu0
        %v571 = vld [vmem:[%s2] sm:$0x1]
        %v573 = vlaneseq
        %v574 = vshrl.u32 %v573, 7
        %v575 = vsub.s32 0, %v574
        %v576 = vrot.slane %v571, %v575
        %v578 = vmul.f32 %v413, %v576
        %v579 = vmul.f32 %v418, %v576
        %v580 = vmul.f32 %v423, %v576
        %v581 = vmul.f32 %v428, %v576
        %v582 = vmul.f32 %v433, %v576
        %v583 = vmul.f32 %v438, %v576
        %v584 = vmul.f32 %v443, %v576
        %v585 = vmul.f32 %v448, %v576
        %v586 = vmul.f32 %v453, %v576
        %v587 = vmul.f32 %v458, %v576
        %v588 = vmul.f32 %v463, %v576
        %v589 = vmul.f32 %v468, %v576
        %v590 = vmul.f32 %v473, %v576
        %v591 = vmul.f32 %v478, %v576
        %v592 = vmul.f32 %v483, %v576
        %v593 = vmul.f32 %v488, %v576
        %v594 = vmul.f32 %v493, %v576
        %v595 = vmul.f32 %v498, %v576
        %v596 = vmul.f32 %v503, %v576
        %v597 = vmul.f32 %v508, %v576
        %v598 = vmul.f32 %v513, %v576
        %v599 = vmul.f32 %v518, %v576
        %v600 = vmul.f32 %v523, %v576
        %v601 = vmul.f32 %v528, %v576
        %v602 = vmul.f32 %v533, %v576
        %v603 = vmul.f32 %v538, %v576
        %v604 = vmul.f32 %v543, %v576
        %v605 = vmul.f32 %v548, %v576
        %v606 = vmul.f32 %v553, %v576
        %v607 = vmul.f32 %v558, %v576
        %v608 = vmul.f32 %v563, %v576
        %v609 = vmul.f32 %v568, %v576
        %610 = vst [vmem:[%s202] sm:$0xff] %v578
        %611 = vst [vmem:[%s202 + $0x8] sm:$0xff] %v579
        %612 = vst [vmem:[%s202 + $0x10] sm:$0xff] %v580
        %613 = vst [vmem:[%s202 + $0x18] sm:$0xff] %v581
        %614 = vst [vmem:[%s202 + $0x20] sm:$0xff] %v582
        %615 = vst [vmem:[%s202 + $0x28] sm:$0xff] %v583
        %616 = vst [vmem:[%s202 + $0x30] sm:$0xff] %v584
        %617 = vst [vmem:[%s202 + $0x38] sm:$0xff] %v585
        %618 = vst [vmem:[%s202 + $0x40] sm:$0xff] %v586
        %619 = vst [vmem:[%s202 + $0x48] sm:$0xff] %v587
        %620 = vst [vmem:[%s202 + $0x50] sm:$0xff] %v588
        %621 = vst [vmem:[%s202 + $0x58] sm:$0xff] %v589
        %622 = vst [vmem:[%s202 + $0x60] sm:$0xff] %v590
        %623 = vst [vmem:[%s202 + $0x68] sm:$0xff] %v591
        %624 = vst [vmem:[%s202 + $0x70] sm:$0xff] %v592
        %625 = vst [vmem:[%s202 + $0x78] sm:$0xff] %v593
        %626 = vst [vmem:[%s202 + $0x80] sm:$0xff] %v594
        %627 = vst [vmem:[%s202 + $0x88] sm:$0xff] %v595
        %628 = vst [vmem:[%s202 + $0x90] sm:$0xff] %v596
        %629 = vst [vmem:[%s202 + $0x98] sm:$0xff] %v597
        %630 = vst [vmem:[%s202 + $0xa0] sm:$0xff] %v598
        %631 = vst [vmem:[%s202 + $0xa8] sm:$0xff] %v599
        %632 = vst [vmem:[%s202 + $0xb0] sm:$0xff] %v600
        %633 = vst [vmem:[%s202 + $0xb8] sm:$0xff] %v601
        %634 = vst [vmem:[%s202 + $0xc0] sm:$0xff] %v602
        %635 = vst [vmem:[%s202 + $0xc8] sm:$0xff] %v603
        %636 = vst [vmem:[%s202 + $0xd0] sm:$0xff] %v604
        %637 = vst [vmem:[%s202 + $0xd8] sm:$0xff] %v605
        %638 = vst [vmem:[%s202 + $0xe0] sm:$0xff] %v606
        %639 = vst [vmem:[%s202 + $0xe8] sm:$0xff] %v607
        %640 = vst [vmem:[%s202 + $0xf0] sm:$0xff] %v608
        %641 = vst [vmem:[%s202 + $0xf8] sm:$0xff] %v609
        %v642 = vpack.c.bf16 %v418, %v413
        %v643 = vpack.c.bf16 %v428, %v423
        %v644 = vpack.c.bf16 %v438, %v433
        %v645 = vpack.c.bf16 %v448, %v443
        %v646 = vpack.c.bf16 %v458, %v453
        %v647 = vpack.c.bf16 %v468, %v463
        %v648 = vpack.c.bf16 %v478, %v473
        %v649 = vpack.c.bf16 %v488, %v483
        %v650 = vpack.c.bf16 %v498, %v493
        %v651 = vpack.c.bf16 %v508, %v503
        %v652 = vpack.c.bf16 %v518, %v513
        %v653 = vpack.c.bf16 %v528, %v523
        %v654 = vpack.c.bf16 %v538, %v533
        %v655 = vpack.c.bf16 %v548, %v543
        %v656 = vpack.c.bf16 %v558, %v553
        %v657 = vpack.c.bf16 %v568, %v563
        %v674 = vunpack.c.l.b16 %v642
        %v675 = vunpack.c.h.b16 %v642
        %v676 = vunpack.c.l.b16 %v643
        %v677 = vunpack.c.h.b16 %v643
        %v678 = vunpack.c.l.b16 %v644
        %v679 = vunpack.c.h.b16 %v644
        %v680 = vunpack.c.l.b16 %v645
        %v681 = vunpack.c.h.b16 %v645
        %v682 = vunpack.c.l.b16 %v646
        %v683 = vunpack.c.h.b16 %v646
        %v684 = vunpack.c.l.b16 %v647
        %v685 = vunpack.c.h.b16 %v647
        %v686 = vunpack.c.l.b16 %v648
        %v687 = vunpack.c.h.b16 %v648
        %v688 = vunpack.c.l.b16 %v649
        %v689 = vunpack.c.h.b16 %v649
        %v690 = vunpack.c.l.b16 %v650
        %v691 = vunpack.c.h.b16 %v650
        %v692 = vunpack.c.l.b16 %v651
        %v693 = vunpack.c.h.b16 %v651
        %v694 = vunpack.c.l.b16 %v652
        %v695 = vunpack.c.h.b16 %v652
        %v696 = vunpack.c.l.b16 %v653
        %v697 = vunpack.c.h.b16 %v653
        %v698 = vunpack.c.l.b16 %v654
        %v699 = vunpack.c.h.b16 %v654
        %v700 = vunpack.c.l.b16 %v655
        %v701 = vunpack.c.h.b16 %v655
        %v702 = vunpack.c.l.b16 %v656
        %v703 = vunpack.c.h.b16 %v656
        %v704 = vunpack.c.l.b16 %v657
        %v705 = vunpack.c.h.b16 %v657
        %v706 = vpack.c.b16 %v674, %v674
        %v707 = vpack.c.b16 %v675, %v675
        %v708 = vpack.c.b16 %v676, %v676
        %v709 = vpack.c.b16 %v677, %v677
        %v710 = vpack.c.b16 %v678, %v678
        %v711 = vpack.c.b16 %v679, %v679
        %v712 = vpack.c.b16 %v680, %v680
        %v713 = vpack.c.b16 %v681, %v681
        %v714 = vpack.c.b16 %v682, %v682
        %v715 = vpack.c.b16 %v683, %v683
        %v716 = vpack.c.b16 %v684, %v684
        %v717 = vpack.c.b16 %v685, %v685
        %v718 = vpack.c.b16 %v686, %v686
        %v719 = vpack.c.b16 %v687, %v687
        %v720 = vpack.c.b16 %v688, %v688
        %v721 = vpack.c.b16 %v689, %v689
        %v722 = vpack.c.b16 %v690, %v690
        %v723 = vpack.c.b16 %v691, %v691
        %v724 = vpack.c.b16 %v692, %v692
        %v725 = vpack.c.b16 %v693, %v693
        %v726 = vpack.c.b16 %v694, %v694
        %v727 = vpack.c.b16 %v695, %v695
        %v728 = vpack.c.b16 %v696, %v696
        %v729 = vpack.c.b16 %v697, %v697
        %v730 = vpack.c.b16 %v698, %v698
        %v731 = vpack.c.b16 %v699, %v699
        %v732 = vpack.c.b16 %v700, %v700
        %v733 = vpack.c.b16 %v701, %v701
        %v734 = vpack.c.b16 %v702, %v702
        %v735 = vpack.c.b16 %v703, %v703
        %v736 = vpack.c.b16 %v704, %v704
        %v737 = vpack.c.b16 %v705, %v705
        %770 = vst [vmem:[%s195] sm:$0xf] %v706
        %771 = vst [vmem:[%s195 + $0x4] sm:$0xf] %v707
        %772 = vst [vmem:[%s195 + $0x8] sm:$0xf] %v708
        %773 = vst [vmem:[%s195 + $0xc] sm:$0xf] %v709
        %774 = vst [vmem:[%s195 + $0x10] sm:$0xf] %v710
        %775 = vst [vmem:[%s195 + $0x14] sm:$0xf] %v711
        %776 = vst [vmem:[%s195 + $0x18] sm:$0xf] %v712
        %777 = vst [vmem:[%s195 + $0x1c] sm:$0xf] %v713
        %778 = vst [vmem:[%s195 + $0x20] sm:$0xf] %v714
        %779 = vst [vmem:[%s195 + $0x24] sm:$0xf] %v715
        %780 = vst [vmem:[%s195 + $0x28] sm:$0xf] %v716
        %781 = vst [vmem:[%s195 + $0x2c] sm:$0xf] %v717
        %782 = vst [vmem:[%s195 + $0x30] sm:$0xf] %v718
        %783 = vst [vmem:[%s195 + $0x34] sm:$0xf] %v719
        %784 = vst [vmem:[%s195 + $0x38] sm:$0xf] %v720
        %785 = vst [vmem:[%s195 + $0x3c] sm:$0xf] %v721
        %786 = vst [vmem:[%s195 + $0x40] sm:$0xf] %v722
        %787 = vst [vmem:[%s195 + $0x44] sm:$0xf] %v723
        %788 = vst [vmem:[%s195 + $0x48] sm:$0xf] %v724
        %789 = vst [vmem:[%s195 + $0x4c] sm:$0xf] %v725
        %790 = vst [vmem:[%s195 + $0x50] sm:$0xf] %v726
        %791 = vst [vmem:[%s195 + $0x54] sm:$0xf] %v727
        %792 = vst [vmem:[%s195 + $0x58] sm:$0xf] %v728
        %793 = vst [vmem:[%s195 + $0x5c] sm:$0xf] %v729
        %794 = vst [vmem:[%s195 + $0x60] sm:$0xf] %v730
        %795 = vst [vmem:[%s195 + $0x64] sm:$0xf] %v731
        %796 = vst [vmem:[%s195 + $0x68] sm:$0xf] %v732
        %797 = vst [vmem:[%s195 + $0x6c] sm:$0xf] %v733
        %798 = vst [vmem:[%s195 + $0x70] sm:$0xf] %v734
        %799 = vst [vmem:[%s195 + $0x74] sm:$0xf] %v735
        %800 = vst [vmem:[%s195 + $0x78] sm:$0xf] %v736
        %801 = vst [vmem:[%s195 + $0x7c] sm:$0xf] %v737
        %s802 = sand.u32 %s98, 1
        %s803 = scalar_lea.sflag [#allocation3], %s802
        %s804 = sand.u32 %s98, 1
        %s805 = smul.addr %s804, 128
        %s806 = scalar_lea.vmem [#allocation2], %s805
        %s807 = sand.u32 %s124, 1
        %s808 = scalar_lea.sflag [#allocation5], %s807
        %s809 = sand.u32 %s124, 1
        %s810 = smul.addr %s809, 256
        %s811 = scalar_lea.vmem [#allocation4], %s810
        // Predicated region
        $region33: #{tpu_custom_call.1} parent=31 // pred_check
          %p812 = pneg %p108
        $region34: #{tpu_custom_call.1} parent=31 // pred_check_branch
          %814 = sbr.rel (%p812) target = $region36
        $region35: #{tpu_custom_call.1} parent=31 // pred_region
          %s815 = smul.u32 32, %s22
          %s817 = ssub.s32 2048, 2048
          %818 = vsyncadd %s803, %s817
          %s819 = smul.addr %s815, 64
          %s820 = scalar_lea.hbm %s3, %s819
          %s821 = sshll.u32 %s806, 4
          %s822 = int_to_ptr.vmem [resolvable:$true] %s821
          %827 = dma.vmem_to_hbm [thread:$0]  %s822, 2048, %s820, %s803, 64, 64, 4
        $region36: #{tpu_custom_call.1} parent=31 // pred_fallthru
          _
        // Predicated region
        $region37: #{tpu_custom_call.1} parent=31 // pred_check
          %p828 = pneg %p134
        $region38: #{tpu_custom_call.1} parent=31 // pred_check_branch
          %830 = sbr.rel (%p828) target = $region40
        $region39: #{tpu_custom_call.1} parent=31 // pred_region
          %s831 = smul.u32 32, %s22
          %s833 = ssub.s32 4096, 4096
          %834 = vsyncadd %s808, %s833
          %s835 = smul.addr %s831, 128
          %s836 = scalar_lea.hbm %s4, %s835
          %s837 = sshll.u32 %s811, 4
          %s838 = int_to_ptr.vmem [resolvable:$true] %s837
          %843 = dma.vmem_to_hbm [thread:$0]  %s838, 4096, %s836, %s808, 128, 128, 8
        $region40: #{tpu_custom_call.1} parent=31 // pred_fallthru
          _
      $region32: #{tpu_custom_call.1} parent=5 // pred_fallthru
        _
      %p844 = scmp.le.s32.totalorder 2, %s17
      // Predicated region
      $region41: #{tpu_custom_call.1} parent=5 // pred_check
        %p845 = pneg %p844
      $region42: #{tpu_custom_call.1} parent=5 // pred_check_branch
        %847 = sbr.rel (%p845) target = $region44
      $region43: #{tpu_custom_call.1} parent=5 // pred_region
        %s848 = ssub.s32 %s17, 2
        // Predicated region
        $region45: #{tpu_custom_call.1} parent=43 // pred_check
          %p849 = pneg %p114
        $region46: #{tpu_custom_call.1} parent=43 // pred_check_branch
          %851 = sbr.rel (%p849) target = $region48
        $region47: #{tpu_custom_call.1} parent=43 // pred_region
          %s852 = sand.u32 %s99, 1
          %s853 = scalar_lea.sflag [#allocation3], %s852
          %s854 = sand.u32 %s99, 1
          %s855 = smul.addr %s854, 128
          %s856 = scalar_lea.vmem [#allocation2], %s855
          %857 = dma.done %s853, 2048
        $region48: #{tpu_custom_call.1} parent=43 // pred_fallthru
          _
        // Predicated region
        $region49: #{tpu_custom_call.1} parent=43 // pred_check
          %p858 = pneg %p140
        $region50: #{tpu_custom_call.1} parent=43 // pred_check_branch
          %860 = sbr.rel (%p858) target = $region52
        $region51: #{tpu_custom_call.1} parent=43 // pred_region
          %s861 = sand.u32 %s125, 1
          %s862 = scalar_lea.sflag [#allocation5], %s861
          %s863 = sand.u32 %s125, 1
          %s864 = smul.addr %s863, 256
          %s865 = scalar_lea.vmem [#allocation4], %s864
          %866 = dma.done %s862, 4096
        $region52: #{tpu_custom_call.1} parent=43 // pred_fallthru
          _
      $region44: #{tpu_custom_call.1} parent=5 // pred_fallthru
        _
    $region6: #{tpu_custom_call.1} parent=1 // loop_footer
      %s21 = sadd.s32 1, %s17
    $region7: #{tpu_custom_call.1} parent=1 // loop_footer_branch
      %16 = sbr.rel target = $region3
    $region8: #{tpu_custom_call.1} parent=1 // loop_exit
      _
    %867 = vsyncpa [#allocation3], 1
    %s868 = scalar_lea.sflag [#allocation3], 1
    %869 = vsyncpa %s868, 1
    %870 = vsyncpa [#allocation5], 1
    %s871 = scalar_lea.sflag [#allocation5], 1
    %872 = vsyncpa %s871, 1

</llo_original>
